<compile_context>
chip_gen: v6e
topology: v6e:2x2x1
jax: 0.10.0
libtpu: 0.0.40
codegen_flags: <defaults>
</compile_context>

<pallas_src>
import math
from typing import NamedTuple

import jax
import jax.numpy as jnp
from jax.experimental import pallas as pl
from jax.experimental.pallas import tpu as pltpu


class AttentionModelFixed(NamedTuple):
    node_embeddings: jax.Array         # (B, N, E)
    context_node_projected: jax.Array  # (B, 1, E)
    glimpse_key: jax.Array             # (H, B, 1, N, E/H)
    glimpse_val: jax.Array             # (H, B, 1, N, E/H)
    logit_key: jax.Array               # (B, 1, N, E)


def _round_up(a, b):
    return (a + b - 1) // b * b


def _fused_embed_proj_kernel(x_ref, we_ref, be_ref, wpf_ref, bpf_ref,
                             emb_ref, proj_ref):
    # x_ref:    (TR, node_dim) f32 row tile
    # we_ref:   (node_dim, E)  f32  == W_init^T
    # be_ref:   (1, E)         f32  == b_init
    # wpf_ref:  (node_dim, 3E) f32  == W_init^T @ W_proj^T   (folded)
    # bpf_ref:  (1, 3E)        f32  == b_init @ W_proj^T     (folded)
    # emb_ref:  (TR, E)        node embeddings
    # proj_ref: (TR, 3E)       node projections [K | V | logit_K]
    x = x_ref[...]
    we = we_ref[...]
    wpf = wpf_ref[...]
    node_dim = x.shape[1]

    # K = node_dim (2) is far too small for the MXU: VPU broadcast-FMAs.
    emb = be_ref[...] + x[:, 0:1] * we[0:1, :]        # (TR, E)  f32
    proj = bpf_ref[...] + x[:, 0:1] * wpf[0:1, :]     # (TR, 3E) f32
    for d in range(1, node_dim):
        xd = x[:, d:d + 1]
        emb = emb + xd * we[d:d + 1, :]
        proj = proj + xd * wpf[d:d + 1, :]

    emb_ref[...] = emb.astype(emb_ref.dtype)
    proj_ref[...] = proj.astype(proj_ref.dtype)


def attention_model_precompute(x, params, n_heads, *, row_tile=4096,
                               out_dtype=jnp.float32):
    """init_embed + _precompute of AttentionModel on TPU via Pallas."""
    B, N, node_dim = x.shape
    w_init, b_init, w_proj, w_fixed = (params["w_init"], params["b_init"],
                                       params["w_proj"], params["w_fixed"])
    E = w_init.shape[0]

    # --- flatten to rows and pick a row tile (multiple of 8) ---
    R = B * N
    TR = min(_round_up(row_tile, 8), _round_up(R, 8))
    num_tiles = pl.cdiv(R, TR)          # partial last tile masked by Pallas
    x_flat = x.reshape(R, node_dim)

    # --- fold both linears into one affine, once, in the wrapper ---
    wi_t = w_init.T.astype(jnp.float32)                       # (node_dim, E)
    be = b_init.reshape(1, E).astype(jnp.float32)             # (1, E)
    wp_t = w_proj.T.astype(jnp.float32)                       # (E, 3E)
    wpf = jnp.dot(wi_t, wp_t, precision="highest")            # (node_dim, 3E)
    bpf = jnp.dot(be, wp_t, precision="highest")              # (1, 3E)

    emb_flat, proj_flat = pl.pallas_call(
        _fused_embed_proj_kernel,
        out_shape=(jax.ShapeDtypeStruct((R, E), out_dtype),
                   jax.ShapeDtypeStruct((R, 3 * E), out_dtype)),
        grid_spec=pltpu.PrefetchScalarGridSpec(
            num_scalar_prefetch=0,
            grid=(num_tiles,),
            in_specs=[
                pl.BlockSpec((TR, node_dim), lambda r: (r, 0)),    # x rows
                pl.BlockSpec((node_dim, E), lambda r: (0, 0)),     # W_init^T
                pl.BlockSpec((1, E), lambda r: (0, 0)),            # b_init
                pl.BlockSpec((node_dim, 3 * E), lambda r: (0, 0)),  # folded W
                pl.BlockSpec((1, 3 * E), lambda r: (0, 0)),        # folded b
            ],
            out_specs=(
                pl.BlockSpec((TR, E), lambda r: (r, 0)),           # emb
                pl.BlockSpec((TR, 3 * E), lambda r: (r, 0)),       # proj
            ),
        ),
        compiler_params=pltpu.CompilerParams(
            dimension_semantics=("parallel",),
            vmem_limit_bytes=32 * 1024 * 1024),
    )(x_flat, wi_t, be, wpf, bpf)

    # --- free bitcast reshapes: rows were produced at their final layout ---
    emb = emb_flat.reshape(B, N, E)                     # node embeddings
    proj = proj_flat.reshape(B, N, 3 * E)               # node projections

    # --- graph mean + project_fixed_context: tiny, stays in plain JAX ---
    graph = emb.astype(jnp.float32).mean(axis=1)        # (B, E)
    ctx = jnp.dot(graph, w_fixed.T)[:, None, :].astype(out_dtype)  # (B, 1, E)

    # --- chunk(3)/_make_heads: layout glue, kept for PyTorch semantic parity ---
    proj4 = proj[:, None, :, :]                         # (B, 1, N, 3E)
    glimpse_key_fixed = proj4[..., :E]
    glimpse_val_fixed = proj4[..., E:2 * E]
    logit_key_fixed = proj4[..., 2 * E:]

    def make_heads(v):
        Bv, S, Nv, Ev = v.shape
        v = v.reshape(Bv, S, Nv, n_heads, Ev // n_heads)
        return jnp.transpose(v, (3, 0, 1, 2, 4))

    return AttentionModelFixed(
        node_embeddings=emb,
        context_node_projected=ctx,
        glimpse_key=make_heads(glimpse_key_fixed),
        glimpse_val=make_heads(glimpse_val_fixed),
        logit_key=logit_key_fixed,
    )


def reference_precompute(x, params, n_heads):
    """Pure-JAX reference replicating the PyTorch semantics."""
    w_init, b_init, w_proj, w_fixed = (params["w_init"], params["b_init"],
                                       params["w_proj"], params["w_fixed"])
    E = w_init.shape[0]
    emb = jnp.einsum("bnd,ed->bne", x, w_init) + b_init           # init_embed
    graph = emb.mean(axis=1)                                      # (B, E)
    ctx = jnp.einsum("be,fe->bf", graph, w_fixed)[:, None, :]     # (B, 1, E)
    proj = jnp.einsum("bne,fe->bnf", emb, w_proj)[:, None, :, :]  # (B,1,N,3E)
    gk, gv, lk = proj[..., :E], proj[..., E:2 * E], proj[..., 2 * E:]

    def make_heads(v):
        Bv, S, Nv, Ev = v.shape
        return jnp.transpose(v.reshape(Bv, S, Nv, n_heads, Ev // n_heads),
                             (3, 0, 1, 2, 4))

    return AttentionModelFixed(emb, ctx, make_heads(gk), make_heads(gv), lk)


def init_params(key, embedding_dim, node_dim=2):
    """Deterministic nn.Linear-style init: U(-1/sqrt(fan_in), 1/sqrt(fan_in))."""
    k1, k2, k3, k4 = jax.random.split(key, 4)

    def uni(k, shape, fan_in):
        bound = 1.0 / math.sqrt(fan_in)
        return jax.random.uniform(k, shape, jnp.float32, -bound, bound)

    return {
        "w_init": uni(k1, (embedding_dim, node_dim), node_dim),
        "b_init": uni(k2, (embedding_dim,), node_dim),
        "w_proj": uni(k3, (3 * embedding_dim, embedding_dim), embedding_dim),
        "w_fixed": uni(k4, (embedding_dim, embedding_dim), embedding_dim),
    }


if __name__ == "__main__":
    B, N, NODE_DIM = 2, 8, 2
    EMBED_DIM, N_HEADS = 32, 8

    key = jax.random.PRNGKey(0)
    kx, kp = jax.random.split(key)
    x = jax.random.uniform(kx, (B, N, NODE_DIM), jnp.float32)   # TSP-style coords
    params = init_params(kp, EMBED_DIM, NODE_DIM)

    fixed = attention_model_precompute(x, params, N_HEADS)
    fixed = jax.tree_util.tree_map(jax.block_until_ready, fixed)

    ref = reference_precompute(x, params, N_HEADS)
    # Folded affine reassociates the f32 projection; compare at 1e-4.
    for got, want in zip(fixed, ref):
        assert got.shape == want.shape, (got.shape, want.shape)
        assert jnp.allclose(got, want, atol=1e-4, rtol=1e-4)

    print("KERNEL_OK")
</pallas_src>

<mosaic_0001>
module attributes {stable_mosaic.version = 11 : i64} {
  func.func @_fused_embed_proj_kernel(%arg0: i32, %arg1: memref<16x2xf32, #tpu.memory_space<vmem>>, %arg2: memref<2x32xf32, #tpu.memory_space<vmem>>, %arg3: memref<1x32xf32, #tpu.memory_space<vmem>>, %arg4: memref<2x96xf32, #tpu.memory_space<vmem>>, %arg5: memref<1x96xf32, #tpu.memory_space<vmem>>, %arg6: memref<16x32xf32, #tpu.memory_space<vmem>>, %arg7: memref<16x96xf32, #tpu.memory_space<vmem>>) attributes {dimension_semantics = [#tpu.dimension_semantics<parallel>], iteration_bounds = array<i64: 1>, scalar_prefetch = 0 : i64, scratch_operands = 0 : i64, tpu.core_type = #tpu.core_type<tc>, window_params = [{transform_indices = @transform_0, window_bounds = array<i64: 16, 2>}, {pipeline_mode = #tpu.pipeline_mode<synchronous>, transform_indices = @transform_1, window_bounds = array<i64: 2, 32>}, {pipeline_mode = #tpu.pipeline_mode<synchronous>, transform_indices = @transform_2, window_bounds = array<i64: 1, 32>}, {pipeline_mode = #tpu.pipeline_mode<synchronous>, transform_indices = @transform_3, window_bounds = array<i64: 2, 96>}, {pipeline_mode = #tpu.pipeline_mode<synchronous>, transform_indices = @transform_4, window_bounds = array<i64: 1, 96>}, {transform_indices = @transform_5, window_bounds = array<i64: 16, 32>}, {transform_indices = @transform_6, window_bounds = array<i64: 16, 96>}]} {
    %c0 = arith.constant 0 : index
    %c0_0 = arith.constant 0 : index
    %0 = vector.load %arg1[%c0, %c0_0] : memref<16x2xf32, #tpu.memory_space<vmem>>, vector<16x2xf32>
    %c0_1 = arith.constant 0 : index
    %c0_2 = arith.constant 0 : index
    %1 = vector.load %arg2[%c0_1, %c0_2] : memref<2x32xf32, #tpu.memory_space<vmem>>, vector<2x32xf32>
    %c0_3 = arith.constant 0 : index
    %c0_4 = arith.constant 0 : index
    %2 = vector.load %arg4[%c0_3, %c0_4] : memref<2x96xf32, #tpu.memory_space<vmem>>, vector<2x96xf32>
    %c0_5 = arith.constant 0 : index
    %c0_6 = arith.constant 0 : index
    %3 = vector.load %arg3[%c0_5, %c0_6] : memref<1x32xf32, #tpu.memory_space<vmem>>, vector<1x32xf32>
    %4 = vector.extract_strided_slice %0 {offsets = [0, 0], sizes = [16, 1], strides = [1, 1]} : vector<16x2xf32> to vector<16x1xf32>
    %5 = vector.extract_strided_slice %1 {offsets = [0, 0], sizes = [1, 32], strides = [1, 1]} : vector<2x32xf32> to vector<1x32xf32>
    %6 = vector.broadcast %4 : vector<16x1xf32> to vector<16x32xf32>
    %7 = vector.broadcast %5 : vector<1x32xf32> to vector<16x32xf32>
    %8 = arith.mulf %6, %7 : vector<16x32xf32>
    %9 = vector.broadcast %3 : vector<1x32xf32> to vector<16x32xf32>
    %10 = arith.addf %9, %8 : vector<16x32xf32>
    %c0_7 = arith.constant 0 : index
    %c0_8 = arith.constant 0 : index
    %11 = vector.load %arg5[%c0_7, %c0_8] : memref<1x96xf32, #tpu.memory_space<vmem>>, vector<1x96xf32>
    %12 = vector.extract_strided_slice %0 {offsets = [0, 0], sizes = [16, 1], strides = [1, 1]} : vector<16x2xf32> to vector<16x1xf32>
    %13 = vector.extract_strided_slice %2 {offsets = [0, 0], sizes = [1, 96], strides = [1, 1]} : vector<2x96xf32> to vector<1x96xf32>
    %14 = vector.broadcast %12 : vector<16x1xf32> to vector<16x96xf32>
    %15 = vector.broadcast %13 : vector<1x96xf32> to vector<16x96xf32>
    %16 = arith.mulf %14, %15 : vector<16x96xf32>
    %17 = vector.broadcast %11 : vector<1x96xf32> to vector<16x96xf32>
    %18 = arith.addf %17, %16 : vector<16x96xf32>
    %19 = vector.extract_strided_slice %0 {offsets = [0, 1], sizes = [16, 1], strides = [1, 1]} : vector<16x2xf32> to vector<16x1xf32>
    %20 = vector.extract_strided_slice %1 {offsets = [1, 0], sizes = [1, 32], strides = [1, 1]} : vector<2x32xf32> to vector<1x32xf32>
    %21 = vector.broadcast %19 : vector<16x1xf32> to vector<16x32xf32>
    %22 = vector.broadcast %20 : vector<1x32xf32> to vector<16x32xf32>
    %23 = arith.mulf %21, %22 : vector<16x32xf32>
    %24 = arith.addf %10, %23 : vector<16x32xf32>
    %25 = vector.extract_strided_slice %2 {offsets = [1, 0], sizes = [1, 96], strides = [1, 1]} : vector<2x96xf32> to vector<1x96xf32>
    %26 = vector.broadcast %19 : vector<16x1xf32> to vector<16x96xf32>
    %27 = vector.broadcast %25 : vector<1x96xf32> to vector<16x96xf32>
    %28 = arith.mulf %26, %27 : vector<16x96xf32>
    %29 = arith.addf %18, %28 : vector<16x96xf32>
    %c0_9 = arith.constant 0 : index
    %c0_10 = arith.constant 0 : index
    %30 = vector.load %arg6[%c0_9, %c0_10] : memref<16x32xf32, #tpu.memory_space<vmem>>, vector<16x32xf32>
    tpu.vector_store %arg6[%c0_9, %c0_10], %24 {strides = array<i32>} : memref<16x32xf32, #tpu.memory_space<vmem>>, vector<16x32xf32>,
    %c0_11 = arith.constant 0 : index
    %c0_12 = arith.constant 0 : index
    %31 = vector.load %arg7[%c0_11, %c0_12] : memref<16x96xf32, #tpu.memory_space<vmem>>, vector<16x96xf32>
    tpu.vector_store %arg7[%c0_11, %c0_12], %29 {strides = array<i32>} : memref<16x96xf32, #tpu.memory_space<vmem>>, vector<16x96xf32>,
    return
  }
  func.func @transform_0(%arg0: i32) -> (i32, i32) {
    %c0_i32 = arith.constant 0 : i32
    %c0_i32_0 = arith.constant 0 : i32
    return %arg0, %c0_i32 : i32, i32
  }
  func.func @transform_1(%arg0: i32) -> (i32, i32) {
    %c0_i32 = arith.constant 0 : i32
    %c0_i32_0 = arith.constant 0 : i32
    %c0_i32_1 = arith.constant 0 : i32
    return %c0_i32, %c0_i32_0 : i32, i32
  }
  func.func @transform_2(%arg0: i32) -> (i32, i32) {
    %c0_i32 = arith.constant 0 : i32
    %c0_i32_0 = arith.constant 0 : i32
    %c0_i32_1 = arith.constant 0 : i32
    return %c0_i32, %c0_i32_0 : i32, i32
  }
  func.func @transform_3(%arg0: i32) -> (i32, i32) {
    %c0_i32 = arith.constant 0 : i32
    %c0_i32_0 = arith.constant 0 : i32
    %c0_i32_1 = arith.constant 0 : i32
    return %c0_i32, %c0_i32_0 : i32, i32
  }
  func.func @transform_4(%arg0: i32) -> (i32, i32) {
    %c0_i32 = arith.constant 0 : i32
    %c0_i32_0 = arith.constant 0 : i32
    %c0_i32_1 = arith.constant 0 : i32
    return %c0_i32, %c0_i32_0 : i32, i32
  }
  func.func @transform_5(%arg0: i32) -> (i32, i32) {
    %c0_i32 = arith.constant 0 : i32
    %c0_i32_0 = arith.constant 0 : i32
    return %arg0, %c0_i32 : i32, i32
  }
  func.func @transform_6(%arg0: i32) -> (i32, i32) {
    %c0_i32 = arith.constant 0 : i32
    %c0_i32_0 = arith.constant 0 : i32
    return %arg0, %c0_i32 : i32, i32
  }
}

</mosaic_0001>

<llo_original>
// kernel: tpu_custom_call.1
$region0: #{tpu_custom_call.1}
  #allocation0 [shape = 'u32[]', space=smem, size = 0x4, offset = 0x4, fixed_abs, tag = 'smem constant byte address 0x4 - core index']
  #allocation1 [shape = 'u32[144,128]{1,0:T(1,128)}', space=vmem, size = 0x12000, scoped, tag = 'internal scratch']
  %s0 = inlined_call_operand.vmem [shape: f32[16,2], index: 0, kind: input, shape index: {}]
  %s1 = inlined_call_operand.vmem [shape: f32[2,32], index: 1, kind: input, shape index: {}]
  %s2 = inlined_call_operand.vmem [shape: f32[1,32], index: 2, kind: input, shape index: {}]
  %s3 = inlined_call_operand.vmem [shape: f32[2,96], index: 3, kind: input, shape index: {}]
  %s4 = inlined_call_operand.vmem [shape: f32[1,96], index: 4, kind: input, shape index: {}]
  %s5 = inlined_call_operand.hbm [shape: f32[16,32], index: 5, kind: output, shape index: {0}]
  %s6 = inlined_call_operand.hbm [shape: f32[16,96], index: 6, kind: output, shape index: {1}]
  %7 = xla_tuple %s5, %s6
  %s8 = sld [smem:[#allocation0]]
  $region38: #{tpu_custom_call.1} parent=0
    _
  %s10 = ssub.s32 1, %s8
  %s11 = scalar_select 0, %s10, %s8
  $region1: #{tpu_custom_call.1} parent=0
    #allocation2 [shape = 'u8[8192]{0}', space=vmem, size = 0x2000, scoped, tag = 'output window, operand 0, single buffered']
    #allocation3 [shape = 's32[1]{0}', space=sflag, size = 0x4, scoped, tag = 'scoped memory for tpu_custom_call.1']
    #allocation4 [shape = 'u8[8192]{0}', space=vmem, size = 0x2000, scoped, tag = 'output window, operand 1, single buffered']
    #allocation5 [shape = 's32[1]{0}', space=sflag, size = 0x4, scoped, tag = 'scoped memory for tpu_custom_call.1']
    %12 = vsyncpa [#allocation3], 0
    %13 = vsyncpa [#allocation5], 0
    // Predicated region
    $region2: #{tpu_custom_call.1} parent=1 // pred_check
      _
    $region3: #{tpu_custom_call.1} parent=1 // pred_check_branch
      %15 = sbr.rel (0) target = $region5
    $region4: #{tpu_custom_call.1} parent=1 // pred_region
      _
    $region5: #{tpu_custom_call.1} parent=1 // pred_fallthru
      _
    // Predicated region
    $region6: #{tpu_custom_call.1} parent=1 // pred_check
      _
    $region7: #{tpu_custom_call.1} parent=1 // pred_check_branch
      %17 = sbr.rel (0) target = $region9
    $region8: #{tpu_custom_call.1} parent=1 // pred_region
      _
    $region9: #{tpu_custom_call.1} parent=1 // pred_fallthru
      _
    // Predicated region
    $region10: #{tpu_custom_call.1} parent=1 // pred_check
      _
    $region11: #{tpu_custom_call.1} parent=1 // pred_check_branch
      %19 = sbr.rel (0) target = $region13
    $region12: #{tpu_custom_call.1} parent=1 // pred_region
      _
    $region13: #{tpu_custom_call.1} parent=1 // pred_fallthru
      _
    // Predicated region
    $region14: #{tpu_custom_call.1} parent=1 // pred_check
      _
    $region15: #{tpu_custom_call.1} parent=1 // pred_check_branch
      %21 = sbr.rel (0) target = $region17
    $region16: #{tpu_custom_call.1} parent=1 // pred_region
      _
    $region17: #{tpu_custom_call.1} parent=1 // pred_fallthru
      _
    // Predicated region
    $region18: #{tpu_custom_call.1} parent=1 // pred_check
      _
    $region19: #{tpu_custom_call.1} parent=1 // pred_check_branch
      %23 = sbr.rel (0) target = $region21
    $region20: #{tpu_custom_call.1} parent=1 // pred_region
      _
    $region21: #{tpu_custom_call.1} parent=1 // pred_fallthru
      _
    %v24 = vld [vmem:[%s0] sm:$0xff]
    %v25 = vld [vmem:[%s0 + $0x8] sm:$0xff]
    %v26 = vld [vmem:[%s1] sm:$0x3]
    %v27 = vld [vmem:[%s3] sm:$0x3]
    %v28 = vld [vmem:[%s2] sm:$0x1]
    %30 = vset.pattern.permute.xlu0 0
    %31 = vperm.xlu0 %30, %v24
    %v32 = vpop.permute.xlu0 %31
    %35 = vset.pattern.permute.xlu0 0
    %36 = vperm.xlu0 %35, %v25
    %v37 = vpop.permute.xlu0 %36
    %v39 = vlaneseq
    %v40 = vshrl.u32 %v39, 7
    %v41 = vsub.s32 0, %v40
    %v42 = vrot.slane %v26, %v41
    %v43 = vmul.f32 %v32, %v42
    %v44 = vmul.f32 %v37, %v42
    %v46 = vlaneseq
    %v47 = vshrl.u32 %v46, 7
    %v48 = vsub.s32 0, %v47
    %v49 = vrot.slane %v28, %v48
    %v51 = vadd.f32 %v49, %v43
    %v52 = vadd.f32 %v49, %v44
    %v53 = vld [vmem:[%s4] sm:$0x1]
    %v54 = vlaneseq
    %v55 = vshrl.u32 %v54, 7
    %v56 = vsub.s32 0, %v55
    %v57 = vrot.slane %v27, %v56
    %v58 = vmul.f32 %v32, %v57
    %v59 = vmul.f32 %v37, %v57
    %v61 = vlaneseq
    %v62 = vshrl.u32 %v61, 7
    %v63 = vsub.s32 0, %v62
    %v64 = vrot.slane %v53, %v63
    %v66 = vadd.f32 %v64, %v58
    %v67 = vadd.f32 %v64, %v59
    %68 = vset.pattern.permute.xlu0 1
    %69 = vperm.xlu0 %68, %v24
    %v70 = vpop.permute.xlu0 %69
    %72 = vset.pattern.permute.xlu0 1
    %73 = vperm.xlu0 %72, %v25
    %v74 = vpop.permute.xlu0 %73
    %v76 = vlaneseq
    %v77 = vshrl.u32 %v76, 7
    %v78 = vsub.s32 1, %v77
    %v79 = vrot.slane %v26, %v78
    %v80 = vmul.f32 %v70, %v79
    %v81 = vmul.f32 %v74, %v79
    %v82 = vadd.f32 %v51, %v80
    %v83 = vadd.f32 %v52, %v81
    %v84 = vlaneseq
    %v85 = vshrl.u32 %v84, 7
    %v86 = vsub.s32 1, %v85
    %v87 = vrot.slane %v27, %v86
    %v88 = vmul.f32 %v70, %v87
    %v89 = vmul.f32 %v74, %v87
    %v90 = vadd.f32 %v66, %v88
    %v91 = vadd.f32 %v67, %v89
    %vm92 = vcmask 261120
    %93 = vst.msk [vmem:[#allocation2] sm:$0xff] %vm92, %v82
    %94 = vst.msk [vmem:[#allocation2 + $0x8] sm:$0xff] %vm92, %v83
    %vm95 = vcmask 785408
    %96 = vst.msk [vmem:[#allocation4] sm:$0xff] %vm95, %v90
    %97 = vst.msk [vmem:[#allocation4 + $0x8] sm:$0xff] %vm95, %v91
    // Predicated region
    $region22: #{tpu_custom_call.1} parent=1 // pred_check
      _
    $region23: #{tpu_custom_call.1} parent=1 // pred_check_branch
      %99 = sbr.rel (0) target = $region25
    $region24: #{tpu_custom_call.1} parent=1 // pred_region
      %s101 = ssub.s32 256, 256
      %102 = vsyncadd [#allocation3], %s101
      %s103 = sshll.u32 [#allocation2], 4
      %s104 = int_to_ptr.vmem [resolvable:$true] %s103
      %109 = dma.vmem_to_hbm [thread:$0]  %s104, 256, %s5, [#allocation3], 128, 128, 8
    $region25: #{tpu_custom_call.1} parent=1 // pred_fallthru
      _
    // Predicated region
    $region26: #{tpu_custom_call.1} parent=1 // pred_check
      _
    $region27: #{tpu_custom_call.1} parent=1 // pred_check_branch
      %111 = sbr.rel (0) target = $region29
    $region28: #{tpu_custom_call.1} parent=1 // pred_region
      %s113 = ssub.s32 256, 256
      %114 = vsyncadd [#allocation5], %s113
      %s115 = sshll.u32 [#allocation4], 4
      %s116 = int_to_ptr.vmem [resolvable:$true] %s115
      %121 = dma.vmem_to_hbm [thread:$0]  %s116, 256, %s6, [#allocation5], 128, 128, 8
    $region29: #{tpu_custom_call.1} parent=1 // pred_fallthru
      _
    // Predicated region
    $region30: #{tpu_custom_call.1} parent=1 // pred_check
      _
    $region31: #{tpu_custom_call.1} parent=1 // pred_check_branch
      %123 = sbr.rel (0) target = $region33
    $region32: #{tpu_custom_call.1} parent=1 // pred_region
      %124 = dma.done [#allocation3], 256
    $region33: #{tpu_custom_call.1} parent=1 // pred_fallthru
      _
    // Predicated region
    $region34: #{tpu_custom_call.1} parent=1 // pred_check
      _
    $region35: #{tpu_custom_call.1} parent=1 // pred_check_branch
      %126 = sbr.rel (0) target = $region37
    $region36: #{tpu_custom_call.1} parent=1 // pred_region
      %127 = dma.done [#allocation5], 256
    $region37: #{tpu_custom_call.1} parent=1 // pred_fallthru
      _
    %128 = vsyncpa [#allocation3], 1
    %129 = vsyncpa [#allocation5], 1

</llo_original>
